<compile_context>
chip_gen: v7x
topology: tpu7x:2x2x1
jax: 0.10.0
libtpu: 0.0.40
codegen_flags: <defaults>
</compile_context>

<pallas_src>
import jax
import jax.numpy as jnp
from jax.experimental import pallas as pl
from jax.experimental.pallas import tpu as pltpu


def get_breakdowns(window_size, steps, future_dimension=144):
    """JAX port of MH_NN.getBreakDowns (static, deterministic constants).

    Mirrors the PyTorch code, including the in-place `steps.append(window)`:
    the forward loop therefore effectively runs over timeDepthAttentions + [window].
    """
    steps = list(steps)
    if window_size not in steps:
        steps.append(window_size)
    attention_depth = {}
    result = jnp.zeros((window_size, future_dimension), jnp.float32)
    for i in steps:
        p1 = jnp.ones((i, future_dimension), jnp.float32)
        p2 = jnp.zeros((window_size - i, future_dimension), jnp.float32)
        attention_depth[i] = jnp.concatenate((p1, p2), axis=0)
        result = result + attention_depth[i]
    attention_rate = {i: attention_depth[i] / result for i in steps}
    return result, attention_depth, attention_rate, steps


def mh_kernel(combined_ref, x_ref, o_ref):
    # combined_ref: (1, WF)  resident constant block (sum_k attention_rate[k])
    # x_ref, o_ref: (TB, WF) lane-dense batch tiles
    # Explicit broadcast (no reliance on implicit leading-dim ref broadcasting).
    c = jnp.broadcast_to(combined_ref[...], o_ref.shape)
    o_ref[...] = x_ref[...] * c


def mh_nn_forward(x, combined):
    """x: (B, W, F) float32, combined: (W, F) float32 -> (B, W, F)."""
    B, W, F = x.shape
    WF = W * F
    # Lane-dense slab: last dim WF = 2160 instead of F = 144 (which would pad
    # to 256 lanes and force masked stores on every row).
    x2 = x.reshape(B, WF)
    c2 = combined.reshape(1, WF)

    # Batch tile: whole batch if small (full-dim block is always legal),
    # otherwise 512 rows (multiple of 8 sublanes, ~4.4 MiB/block of f32).
    TB = B if B <= 512 else 512
    grid = (pl.cdiv(B, TB),)

    out2 = pl.pallas_call(
        mh_kernel,
        out_shape=jax.ShapeDtypeStruct((B, WF), x.dtype),
        grid=grid,
        in_specs=[
            pl.BlockSpec((1, WF), lambda i: (0, 0)),    # combined: resident
            pl.BlockSpec((TB, WF), lambda i: (i, 0)),   # x: batch-blocked
        ],
        out_specs=pl.BlockSpec((TB, WF), lambda i: (i, 0)),
        compiler_params=pltpu.CompilerParams(
            dimension_semantics=("parallel",),          # megacore split on v7x
        ),
    )(c2, x2)
    return out2.reshape(B, W, F)


if __name__ == "__main__":
    # Module configuration (defaults from MH_NN.__init__ / getBreakDowns)
    window = 15
    future_dimension = 144
    time_depth_attentions = [5, 10]  # window (15) is appended inside getBreakDowns

    # TODO(synk): the GRU baseModel's output is overwritten immediately in the
    # original forward (dead code), so it is intentionally not instantiated.
    _, _, attention_rate, steps = get_breakdowns(
        window, time_depth_attentions, future_dimension
    )
    rates = jnp.stack([attention_rate[i] for i in steps], axis=0)   # (K, W, F)
    combined = jnp.sum(rates, axis=0)                               # (W, F); ~= 1 by construction

    # Deterministic example input
    key = jax.random.PRNGKey(0)
    B = 2
    x = jax.random.normal(key, (B, window, future_dimension), dtype=jnp.float32)

    out = jax.block_until_ready(mh_nn_forward(x, combined))

    # Pure-JAX reference of the effective forward: sum_k rate[k] * x
    ref = jnp.einsum("kwf,bwf->bwf", rates, x)
    assert out.shape == x.shape and out.dtype == x.dtype
    assert jnp.allclose(out, ref, atol=1e-5, rtol=1e-5)
    # Sanity check of the algebraic identity exploited by the optimization
    # (sum of attention rates is ~1, so the forward is numerically ~identity).
    assert jnp.allclose(combined, jnp.ones_like(combined), atol=1e-6)

    print("KERNEL_OK")
</pallas_src>

<mosaic_0001>
module attributes {stable_mosaic.version = 11 : i64} {
  func.func @mh_kernel(%arg0: i32, %arg1: memref<1x2160xf32, #tpu.memory_space<vmem>>, %arg2: memref<2x2160xf32, #tpu.memory_space<vmem>>, %arg3: memref<2x2160xf32, #tpu.memory_space<vmem>>) attributes {dimension_semantics = [#tpu.dimension_semantics<parallel>], iteration_bounds = array<i64: 1>, scalar_prefetch = 0 : i64, scratch_operands = 0 : i64, tpu.core_type = #tpu.core_type<tc>, window_params = [{pipeline_mode = #tpu.pipeline_mode<synchronous>, transform_indices = @transform_0, window_bounds = array<i64: 1, 2160>}, {transform_indices = @transform_1, window_bounds = array<i64: 2, 2160>}, {transform_indices = @transform_2, window_bounds = array<i64: 2, 2160>}]} {
    %c0 = arith.constant 0 : index
    %c0_0 = arith.constant 0 : index
    %0 = vector.load %arg1[%c0, %c0_0] : memref<1x2160xf32, #tpu.memory_space<vmem>>, vector<1x2160xf32>
    %1 = vector.shape_cast %0 : vector<1x2160xf32> to vector<1x2160xf32>
    %2 = vector.broadcast %1 : vector<1x2160xf32> to vector<2x2160xf32>
    %c0_1 = arith.constant 0 : index
    %c0_2 = arith.constant 0 : index
    %3 = vector.load %arg2[%c0_1, %c0_2] : memref<2x2160xf32, #tpu.memory_space<vmem>>, vector<2x2160xf32>
    %4 = arith.mulf %3, %2 : vector<2x2160xf32>
    %c0_3 = arith.constant 0 : index
    %c0_4 = arith.constant 0 : index
    %5 = vector.load %arg3[%c0_3, %c0_4] : memref<2x2160xf32, #tpu.memory_space<vmem>>, vector<2x2160xf32>
    tpu.vector_store %arg3[%c0_3, %c0_4], %4 {strides = array<i32>} : memref<2x2160xf32, #tpu.memory_space<vmem>>, vector<2x2160xf32>,
    return
  }
  func.func @transform_0(%arg0: i32) -> (i32, i32) {
    %c0_i32 = arith.constant 0 : i32
    %c0_i32_0 = arith.constant 0 : i32
    %c0_i32_1 = arith.constant 0 : i32
    return %c0_i32, %c0_i32_0 : i32, i32
  }
  func.func @transform_1(%arg0: i32) -> (i32, i32) {
    %c0_i32 = arith.constant 0 : i32
    %c0_i32_0 = arith.constant 0 : i32
    return %arg0, %c0_i32 : i32, i32
  }
  func.func @transform_2(%arg0: i32) -> (i32, i32) {
    %c0_i32 = arith.constant 0 : i32
    %c0_i32_0 = arith.constant 0 : i32
    return %arg0, %c0_i32 : i32, i32
  }
}

</mosaic_0001>

<llo_original>
// kernel: tpu_custom_call.1
$region0: #{tpu_custom_call.1}
  #allocation0 [shape = 'u32[]', space=smem, size = 0x4, offset = 0x4, fixed_abs, tag = 'smem constant byte address 0x4 - core index']
  #allocation1 [shape = 'u32[144,128]{1,0:T(1,128)}', space=vmem, size = 0x12000, scoped, tag = 'internal scratch']
  %s0 = inlined_call_operand.hbm [shape: f32[1,2160], index: 0, kind: input, shape index: {}]
  %s1 = inlined_call_operand.hbm [shape: f32[2,2160], index: 1, kind: input, shape index: {}]
  %s2 = inlined_call_operand.hbm [shape: f32[2,2160], index: 2, kind: output, shape index: {}]
  %s3 = sld [smem:[#allocation0]]
  $region26: #{tpu_custom_call.1} parent=0
    _
  %s5 = ssub.s32 1, %s3
  %s6 = scalar_select 0, %s5, %s3
  $region1: #{tpu_custom_call.1} parent=0
    #allocation2 [shape = 'u8[8704]{0}', space=vmem, size = 0x2400, scoped, tag = 'input window, operand 0, single buffered']
    #allocation3 [shape = 's32[1]{0}', space=sflag, size = 0x4, scoped, tag = 'scoped memory for tpu_custom_call.1']
    #allocation4 [shape = 's32[1]{0}', space=sflag, size = 0x4, scoped, tag = 'scoped memory for tpu_custom_call.1']
    #allocation5 [shape = 'u8[17408]{0}', space=vmem, size = 0x4400, scoped, tag = 'input window, operand 1, single buffered']
    #allocation6 [shape = 's32[1]{0}', space=sflag, size = 0x4, scoped, tag = 'scoped memory for tpu_custom_call.1']
    #allocation7 [shape = 'u8[17408]{0}', space=vmem, size = 0x4400, scoped, tag = 'output window, operand 0, single buffered']
    %7 = vsyncpa [#allocation3], 0
    %8 = vsyncpa [#allocation6], 0
    %9 = vsyncpa [#allocation4], 0
    // Predicated region
    $region2: #{tpu_custom_call.1} parent=1 // pred_check
      _
    $region3: #{tpu_custom_call.1} parent=1 // pred_check_branch
      %11 = sbr.rel (0) target = $region5
    $region4: #{tpu_custom_call.1} parent=1 // pred_region
      %s13 = ssub.s32 272, 272
      %14 = vsyncadd [#allocation3], %s13
      %s16 = sshll.u32 [#allocation2], 4
      %s17 = int_to_ptr.vmem [resolvable:$true] %s16
      %19 = dma.hbm_to_vmem [thread:$0]  %s0, 272, %s17, [#allocation3]
    $region5: #{tpu_custom_call.1} parent=1 // pred_fallthru
      _
    // Predicated region
    $region6: #{tpu_custom_call.1} parent=1 // pred_check
      _
    $region7: #{tpu_custom_call.1} parent=1 // pred_check_branch
      %21 = sbr.rel (0) target = $region9
    $region8: #{tpu_custom_call.1} parent=1 // pred_region
      %s23 = ssub.s32 544, 544
      %24 = vsyncadd [#allocation6], %s23
      %s26 = sshll.u32 [#allocation5], 4
      %s27 = int_to_ptr.vmem [resolvable:$true] %s26
      %29 = dma.hbm_to_vmem [thread:$0]  %s1, 544, %s27, [#allocation6]
    $region9: #{tpu_custom_call.1} parent=1 // pred_fallthru
      _
    // Predicated region
    $region10: #{tpu_custom_call.1} parent=1 // pred_check
      _
    $region11: #{tpu_custom_call.1} parent=1 // pred_check_branch
      %31 = sbr.rel (0) target = $region13
    $region12: #{tpu_custom_call.1} parent=1 // pred_region
      %32 = dma.done [#allocation3], 272
    $region13: #{tpu_custom_call.1} parent=1 // pred_fallthru
      _
    // Predicated region
    $region14: #{tpu_custom_call.1} parent=1 // pred_check
      _
    $region15: #{tpu_custom_call.1} parent=1 // pred_check_branch
      %34 = sbr.rel (0) target = $region17
    $region16: #{tpu_custom_call.1} parent=1 // pred_region
      %35 = dma.done [#allocation6], 544
    $region17: #{tpu_custom_call.1} parent=1 // pred_fallthru
      _
    %v36 = vld [vmem:[#allocation2] sm:$0xff]
    %v37 = vld [vmem:[#allocation2 + $0x8] sm:$0xff]
    %v38 = vld [vmem:[#allocation2 + $0x10] sm:$0x1]
    %v42 = vlaneseq
    %v43 = vshrl.u32 %v42, 7
    %v44 = vsub.s32 0, %v43
    %v45 = vrot.slane %v36, %v44
    %v46 = vlaneseq
    %v47 = vshrl.u32 %v46, 7
    %v48 = vsub.s32 1, %v47
    %v49 = vrot.slane %v36, %v48
    %v50 = vlaneseq
    %v51 = vshrl.u32 %v50, 7
    %v52 = vsub.s32 2, %v51
    %v53 = vrot.slane %v36, %v52
    %v54 = vlaneseq
    %v55 = vshrl.u32 %v54, 7
    %v56 = vsub.s32 3, %v55
    %v57 = vrot.slane %v36, %v56
    %v58 = vlaneseq
    %v59 = vshrl.u32 %v58, 7
    %v60 = vsub.s32 4, %v59
    %v61 = vrot.slane %v36, %v60
    %v62 = vlaneseq
    %v63 = vshrl.u32 %v62, 7
    %v64 = vsub.s32 5, %v63
    %v65 = vrot.slane %v36, %v64
    %v66 = vlaneseq
    %v67 = vshrl.u32 %v66, 7
    %v68 = vsub.s32 6, %v67
    %v69 = vrot.slane %v36, %v68
    %v70 = vlaneseq
    %v71 = vshrl.u32 %v70, 7
    %v72 = vsub.s32 7, %v71
    %v73 = vrot.slane %v36, %v72
    %v74 = vlaneseq
    %v75 = vshrl.u32 %v74, 7
    %v76 = vsub.s32 0, %v75
    %v77 = vrot.slane %v37, %v76
    %v78 = vlaneseq
    %v79 = vshrl.u32 %v78, 7
    %v80 = vsub.s32 1, %v79
    %v81 = vrot.slane %v37, %v80
    %v82 = vlaneseq
    %v83 = vshrl.u32 %v82, 7
    %v84 = vsub.s32 2, %v83
    %v85 = vrot.slane %v37, %v84
    %v86 = vlaneseq
    %v87 = vshrl.u32 %v86, 7
    %v88 = vsub.s32 3, %v87
    %v89 = vrot.slane %v37, %v88
    %v90 = vlaneseq
    %v91 = vshrl.u32 %v90, 7
    %v92 = vsub.s32 4, %v91
    %v93 = vrot.slane %v37, %v92
    %v94 = vlaneseq
    %v95 = vshrl.u32 %v94, 7
    %v96 = vsub.s32 5, %v95
    %v97 = vrot.slane %v37, %v96
    %v98 = vlaneseq
    %v99 = vshrl.u32 %v98, 7
    %v100 = vsub.s32 6, %v99
    %v101 = vrot.slane %v37, %v100
    %v102 = vlaneseq
    %v103 = vshrl.u32 %v102, 7
    %v104 = vsub.s32 7, %v103
    %v105 = vrot.slane %v37, %v104
    %v106 = vlaneseq
    %v107 = vshrl.u32 %v106, 7
    %v108 = vsub.s32 0, %v107
    %v109 = vrot.slane %v38, %v108
    %v110 = vld [vmem:[#allocation5] sm:$0xff]
    %v111 = vld [vmem:[#allocation5 + $0x8] sm:$0xff]
    %v112 = vld [vmem:[#allocation5 + $0x10] sm:$0xff]
    %v113 = vld [vmem:[#allocation5 + $0x18] sm:$0xff]
    %v114 = vld [vmem:[#allocation5 + $0x20] sm:$0x3]
    %v115 = vcombine.low %v45, %v49
    %v116 = vcombine.low %v53, %v57
    %v118 = vunpack.c.l.s4 1983009808
    %v119 = vunpack.c.0.s8 %v118
    %v120 = vlaneseq
    %v121 = vshrl.u32 %v120, 7
    %v122 = vsub.s32 %v119, %v121
    %v123 = vrot.slane %v115, %v122
    %v125 = vunpack.c.l.s4 1983009808
    %v126 = vunpack.c.0.s8 %v125
    %v127 = vlaneseq
    %v128 = vshrl.u32 %v127, 7
    %v129 = vsub.s32 %v126, %v128
    %v130 = vrot.slane %v116, %v129
    %v131 = vcombine.low %v123, %v130
    %v132 = vcombine.low %v61, %v65
    %v133 = vcombine.low %v69, %v73
    %v135 = vunpack.c.l.s4 1983009808
    %v136 = vunpack.c.0.s8 %v135
    %v137 = vlaneseq
    %v138 = vshrl.u32 %v137, 7
    %v139 = vsub.s32 %v136, %v138
    %v140 = vrot.slane %v132, %v139
    %v142 = vunpack.c.l.s4 1983009808
    %v143 = vunpack.c.0.s8 %v142
    %v144 = vlaneseq
    %v145 = vshrl.u32 %v144, 7
    %v146 = vsub.s32 %v143, %v145
    %v147 = vrot.slane %v133, %v146
    %v148 = vcombine.low %v140, %v147
    %v149 = vcombine.low %v77, %v81
    %v150 = vcombine.low %v85, %v89
    %v152 = vunpack.c.l.s4 1983009808
    %v153 = vunpack.c.0.s8 %v152
    %v154 = vlaneseq
    %v155 = vshrl.u32 %v154, 7
    %v156 = vsub.s32 %v153, %v155
    %v157 = vrot.slane %v149, %v156
    %v159 = vunpack.c.l.s4 1983009808
    %v160 = vunpack.c.0.s8 %v159
    %v161 = vlaneseq
    %v162 = vshrl.u32 %v161, 7
    %v163 = vsub.s32 %v160, %v162
    %v164 = vrot.slane %v150, %v163
    %v165 = vcombine.low %v157, %v164
    %v166 = vcombine.low %v93, %v97
    %v167 = vcombine.low %v101, %v105
    %v169 = vunpack.c.l.s4 1983009808
    %v170 = vunpack.c.0.s8 %v169
    %v171 = vlaneseq
    %v172 = vshrl.u32 %v171, 7
    %v173 = vsub.s32 %v170, %v172
    %v174 = vrot.slane %v166, %v173
    %v176 = vunpack.c.l.s4 1983009808
    %v177 = vunpack.c.0.s8 %v176
    %v178 = vlaneseq
    %v179 = vshrl.u32 %v178, 7
    %v180 = vsub.s32 %v177, %v179
    %v181 = vrot.slane %v167, %v180
    %v182 = vcombine.low %v174, %v181
    %v184 = vunpack.c.l.s4 1983009808
    %v185 = vunpack.c.0.s8 %v184
    %v186 = vlaneseq
    %v187 = vshrl.u32 %v186, 7
    %v188 = vsub.s32 %v185, %v187
    %v189 = vrot.slane %v109, %v188
    %v195 = vmul.f32 %v110, %v131
    %v196 = vmul.f32 %v111, %v148
    %v197 = vmul.f32 %v112, %v165
    %v198 = vmul.f32 %v113, %v182
    %v199 = vmul.f32 %v114, %v189
    %200 = vst [vmem:[#allocation7] sm:$0xff] %v195
    %201 = vst [vmem:[#allocation7 + $0x8] sm:$0xff] %v196
    %202 = vst [vmem:[#allocation7 + $0x10] sm:$0xff] %v197
    %203 = vst [vmem:[#allocation7 + $0x18] sm:$0xff] %v198
    %vm204 = vcmask 910336
    %205 = vst.msk [vmem:[#allocation7 + $0x20] sm:$0x3] %vm204, %v199
    // Predicated region
    $region18: #{tpu_custom_call.1} parent=1 // pred_check
      _
    $region19: #{tpu_custom_call.1} parent=1 // pred_check_branch
      %207 = sbr.rel (0) target = $region21
    $region20: #{tpu_custom_call.1} parent=1 // pred_region
      %s209 = ssub.s32 544, 544
      %210 = vsyncadd [#allocation4], %s209
      %s212 = sshll.u32 [#allocation7], 4
      %s213 = int_to_ptr.vmem [resolvable:$true] %s212
      %215 = dma.vmem_to_hbm [thread:$0]  %s213, 544, %s2, [#allocation4]
    $region21: #{tpu_custom_call.1} parent=1 // pred_fallthru
      _
    // Predicated region
    $region22: #{tpu_custom_call.1} parent=1 // pred_check
      _
    $region23: #{tpu_custom_call.1} parent=1 // pred_check_branch
      %217 = sbr.rel (0) target = $region25
    $region24: #{tpu_custom_call.1} parent=1 // pred_region
      %218 = dma.done [#allocation4], 544
    $region25: #{tpu_custom_call.1} parent=1 // pred_fallthru
      _
    %219 = vsyncpa [#allocation3], 1
    %220 = vsyncpa [#allocation6], 1
    %221 = vsyncpa [#allocation4], 1

</llo_original>
